<compile_context>
chip_gen: v5e
topology: v5e:2x2
jax: 0.10.0
libtpu: 0.0.40
codegen_flags: <defaults>
</compile_context>

<pallas_src>
import jax
import jax.numpy as jnp
from jax import lax
from jax.experimental import pallas as pl
from jax.experimental.pallas import tpu as pltpu

BN_EPS = 1e-5


def _make_kernel(*, length, kernel_size, pad, true_nl, has_adjust):
    def kernel(*refs):
        if has_adjust:
            x_ref, w_ref, wadj_ref, gamma_ref, beta_ref, o_ref = refs
        else:
            x_ref, w_ref, gamma_ref, beta_ref, o_ref = refs

        x2d = x_ref[...]                                  # (C_in_p, NL_pad), in vregs
        c_out_p = o_ref.shape[0]
        nl_pad = x2d.shape[1]

        # Per-column position within each batch segment + "real column" mask.
        col = lax.broadcasted_iota(jnp.int32, (1, nl_pad), 1)
        l_idx = col % length
        valid_col = col < true_nl

        # ---- Conv1d('same', bias=False): K accumulated MXU matmuls (one per tap) ----
        y = jnp.zeros((c_out_p, nl_pad), jnp.float32)
        for k in range(kernel_size):
            s = k - pad
            if s == 0:
                tap = x2d
            else:
                # XLU lane rotate: tap[:, c] = x2d[:, c + s]; wrapped, cross-segment
                # and padded columns are zeroed by the mask.
                tap = pltpu.roll(x2d, shift=(-s) % nl_pad, axis=1)
                valid = jnp.logical_and(
                    jnp.logical_and(l_idx + s >= 0, l_idx + s < length), valid_col)
                tap = jnp.where(valid, tap, 0)
            y = y + jnp.dot(w_ref[k], tap, preferred_element_type=jnp.float32)

        # ---- residual path: 1x1 conv, or identity when channels already match ----
        if has_adjust:
            identity = jnp.dot(wadj_ref[...], x2d, preferred_element_type=jnp.float32)
        else:
            identity = x2d.astype(jnp.float32)

        # ---- BatchNorm1d, training-mode batch statistics (biased variance) ----
        inv_cnt = 1.0 / float(true_nl)
        mean = jnp.sum(y, axis=-1, keepdims=True) * inv_cnt          # (C_out_p, 1)
        diff = y - mean
        diff_m = jnp.where(valid_col, diff, 0.0)                     # exclude pad cols
        var = jnp.sum(diff_m * diff_m, axis=-1, keepdims=True) * inv_cnt
        inv_std = lax.rsqrt(var + BN_EPS)                            # EUP
        y_bn = diff * (inv_std * gamma_ref[...]) + beta_ref[...]

        # ---- residual add + ReLU ----
        out = jnp.maximum(y_bn + identity, 0.0)
        # TODO(synk): nn.Dropout is stochastic in training mode; implemented as the
        # identity (inference semantics) since PyTorch's RNG stream cannot be matched.
        o_ref[...] = out.astype(o_ref.dtype)

    return kernel


def simple_cnn_1layer_with_residual(x, weight, w_adjust, gamma, beta,
                                    *, compute_dtype=jnp.float32):
    """Fused Conv1d('same') + BN(batch stats) + residual(1x1) + ReLU (+ eval Dropout)."""
    N, C_in, L = x.shape
    C_out, _, K = weight.shape
    if K % 2 != 1:
        raise ValueError("only odd kernel sizes (symmetric 'same' padding) supported")
    pad = (K - 1) // 2
    NL = N * L
    NL_pad = ((NL + 127) // 128) * 128          # lane-dense output stores
    C_in_p = ((C_in + 7) // 8) * 8              # sublane-aligned operands
    C_out_p = ((C_out + 7) // 8) * 8
    has_adjust = w_adjust is not None

    # ---- wrapper-side layout plumbing only ----
    x2d = jnp.transpose(x, (1, 0, 2)).reshape(C_in, NL)
    x2d = jnp.pad(x2d, ((0, C_in_p - C_in), (0, NL_pad - NL))).astype(compute_dtype)
    w3d = jnp.transpose(weight, (2, 0, 1))                          # (K, C_out, C_in)
    w3d = jnp.pad(w3d, ((0, 0), (0, C_out_p - C_out), (0, C_in_p - C_in))
                  ).astype(compute_dtype)
    g2d = jnp.pad(gamma.reshape(C_out, 1).astype(jnp.float32),
                  ((0, C_out_p - C_out), (0, 0)))
    b2d = jnp.pad(beta.reshape(C_out, 1).astype(jnp.float32),
                  ((0, C_out_p - C_out), (0, 0)))

    args = [x2d, w3d]
    if has_adjust:
        wadj = jnp.pad(w_adjust.reshape(C_out, C_in),
                       ((0, C_out_p - C_out), (0, C_in_p - C_in))).astype(compute_dtype)
        args.append(wadj)
    args += [g2d, b2d]

    kernel = _make_kernel(length=L, kernel_size=K, pad=pad, true_nl=NL,
                          has_adjust=has_adjust)

    flops = (2 * K * C_out_p * C_in_p * NL_pad
             + (2 * C_out_p * C_in_p * NL_pad if has_adjust else 0)
             + 10 * C_out_p * NL_pad)
    bytes_accessed = (sum(a.size * a.dtype.itemsize for a in args)
                      + 4 * C_out_p * NL_pad)

    out2d = pl.pallas_call(
        kernel,
        out_shape=jax.ShapeDtypeStruct((C_out_p, NL_pad), jnp.float32),
        cost_estimate=pl.CostEstimate(flops=flops, transcendentals=C_out_p,
                                      bytes_accessed=bytes_accessed),
    )(*args)

    # unpack lane-dense (C_out_p, NL_pad) -> (N, C_out, L)
    return jnp.transpose(out2d[:C_out, :NL].reshape(C_out, N, L), (1, 0, 2))


if __name__ == "__main__":
    key = jax.random.PRNGKey(0)
    k1, k2, k3, k4, k5 = jax.random.split(key, 5)

    # Small shapes consistent with the module: Conv1d over (N, C_in, L).
    N, C_in, C_out, L, K = 2, 4, 32, 16, 3

    x = jax.random.normal(k1, (N, C_in, L), jnp.float32)
    bound = (1.0 / (C_in * K)) ** 0.5
    weight = jax.random.uniform(k2, (C_out, C_in, K), jnp.float32, -bound, bound)
    bound1 = (1.0 / C_in) ** 0.5
    w_adjust = jax.random.uniform(k5, (C_out, C_in, 1), jnp.float32, -bound1, bound1)
    gamma = jax.random.uniform(k3, (C_out,), jnp.float32, 0.5, 1.5)
    beta = jax.random.normal(k4, (C_out,), jnp.float32) * 0.1

    out = jax.block_until_ready(
        simple_cnn_1layer_with_residual(x, weight, w_adjust, gamma, beta))

    # Pure-JAX reference of the module forward (training-mode BN, eval-mode dropout).
    pad = (K - 1) // 2
    y = lax.conv_general_dilated(x, weight, window_strides=(1,),
                                 padding=[(pad, pad)],
                                 dimension_numbers=("NCH", "OIH", "NCH"),
                                 precision=lax.Precision.HIGHEST)
    mean = jnp.mean(y, axis=(0, 2), keepdims=True)
    var = jnp.mean((y - mean) ** 2, axis=(0, 2), keepdims=True)
    y_bn = ((y - mean) / jnp.sqrt(var + BN_EPS)
            * gamma.reshape(1, -1, 1) + beta.reshape(1, -1, 1))
    identity = lax.conv_general_dilated(x, w_adjust, window_strides=(1,),
                                        padding=[(0, 0)],
                                        dimension_numbers=("NCH", "OIH", "NCH"),
                                        precision=lax.Precision.HIGHEST)
    ref = jnp.maximum(y_bn + identity, 0.0)

    assert out.shape == (N, C_out, L)
    err = float(jnp.max(jnp.abs(out - ref)))
    assert bool(jnp.allclose(out, ref, atol=1e-2, rtol=1e-2)), f"max abs err = {err}"
    print("KERNEL_OK")
</pallas_src>

<mosaic_0001>
module attributes {stable_mosaic.version = 11 : i64} {
  func.func @kernel(%arg0: memref<8x128xf32, #tpu.memory_space<vmem>>, %arg1: memref<3x32x8xf32, #tpu.memory_space<vmem>>, %arg2: memref<32x8xf32, #tpu.memory_space<vmem>>, %arg3: memref<32x1xf32, #tpu.memory_space<vmem>>, %arg4: memref<32x1xf32, #tpu.memory_space<vmem>>, %arg5: memref<32x128xf32, #tpu.memory_space<vmem>>) attributes {dimension_semantics = [], scalar_prefetch = 0 : i64, scratch_operands = 0 : i64, tpu.core_type = #tpu.core_type<tc>} {
    %c0 = arith.constant 0 : index
    %c0_0 = arith.constant 0 : index
    %0 = vector.load %arg0[%c0, %c0_0] : memref<8x128xf32, #tpu.memory_space<vmem>>, vector<8x128xf32>
    %1 = tpu.iota {dimensions = array<i32: 1>} : vector<1x128xi32>
    %c16_i32 = arith.constant 16 : i32
    %c0_i32 = arith.constant 0 : i32
    %2 = arith.cmpi eq, %c16_i32, %c0_i32 : i32
    %c1_i32 = arith.constant 1 : i32
    %3 = arith.select %2, %c1_i32, %c16_i32 : i32
    %4 = vector.broadcast %3 : i32 to vector<1x128xi32>
    %5 = arith.remsi %1, %4 : vector<1x128xi32>
    %c0_i32_1 = arith.constant 0 : i32
    %6 = vector.broadcast %c0_i32_1 : i32 to vector<1x128xi32>
    %7 = arith.cmpi ne, %5, %6 : vector<1x128xi32>
    %c0_i32_2 = arith.constant 0 : i32
    %8 = vector.broadcast %c0_i32_2 : i32 to vector<1x128xi32>
    %9 = arith.cmpi slt, %5, %8 : vector<1x128xi32>
    %c0_i32_3 = arith.constant 0 : i32
    %10 = arith.cmpi slt, %3, %c0_i32_3 : i32
    %11 = vector.broadcast %10 : i1 to vector<1x128xi1>
    %12 = vector.broadcast %11 : vector<1x128xi1> to vector<1x128xi1>
    %13 = arith.xori %9, %12 : vector<1x128xi1>
    %14 = arith.andi %13, %7 : vector<1x128xi1>
    %15 = vector.broadcast %3 : i32 to vector<1x128xi32>
    %16 = arith.addi %5, %15 : vector<1x128xi32>
    %17 = arith.select %14, %16, %5 : vector<1x128xi1>, vector<1x128xi32>
    %c32_i32 = arith.constant 32 : i32
    %18 = vector.broadcast %c32_i32 : i32 to vector<1x128xi32>
    %19 = arith.cmpi slt, %1, %18 : vector<1x128xi32>
    %cst = arith.constant 0.000000e+00 : f32
    %20 = vector.broadcast %cst : f32 to vector<32x128xf32>
    %c1_i32_4 = arith.constant 1 : i32
    %21 = tpu.dynamic_rotate %0 by %c1_i32_4 dim 1 : vector<8x128xf32>, i32 -> vector<8x128xf32>
    %c-1_i32 = arith.constant -1 : i32
    %22 = vector.broadcast %c-1_i32 : i32 to vector<1x128xi32>
    %23 = arith.addi %17, %22 : vector<1x128xi32>
    %c0_i32_5 = arith.constant 0 : i32
    %24 = vector.broadcast %c0_i32_5 : i32 to vector<1x128xi32>
    %25 = arith.cmpi sge, %23, %24 : vector<1x128xi32>
    %c-1_i32_6 = arith.constant -1 : i32
    %26 = vector.broadcast %c-1_i32_6 : i32 to vector<1x128xi32>
    %27 = arith.addi %17, %26 : vector<1x128xi32>
    %c16_i32_7 = arith.constant 16 : i32
    %28 = vector.broadcast %c16_i32_7 : i32 to vector<1x128xi32>
    %29 = arith.cmpi slt, %27, %28 : vector<1x128xi32>
    %30 = arith.andi %25, %29 : vector<1x128xi1>
    %31 = arith.andi %30, %19 : vector<1x128xi1>
    %c0_i32_8 = arith.constant 0 : i32
    %32 = arith.sitofp %c0_i32_8 : i32 to f32
    %33 = vector.shape_cast %31 : vector<1x128xi1> to vector<1x128xi1>
    %34 = vector.broadcast %33 : vector<1x128xi1> to vector<8x128xi1>
    %35 = vector.broadcast %32 : f32 to vector<8x128xf32>
    %36 = arith.select %34, %21, %35 : vector<8x128xi1>, vector<8x128xf32>
    %c0_9 = arith.constant 0 : index
    %c0_10 = arith.constant 0 : index
    %c0_11 = arith.constant 0 : index
    %37 = vector.load %arg1[%c0_9, %c0_10, %c0_11] : memref<3x32x8xf32, #tpu.memory_space<vmem>>, vector<1x32x8xf32>
    %38 = vector.shape_cast %37 : vector<1x32x8xf32> to vector<32x8xf32>
    %cst_12 = arith.constant dense<0.000000e+00> : vector<32x128xf32>
    %39 = tpu.matmul %38, %36, %cst_12 {dimension_numbers = #tpu.dot_dimension_numbers<[1], [0], [0], [1], [0, 0, 1, 1], [], []>} : vector<32x8xf32>, vector<8x128xf32>, vector<32x128xf32> -> vector<32x128xf32>
    %40 = arith.addf %20, %39 : vector<32x128xf32>
    %c1 = arith.constant 1 : index
    %c0_13 = arith.constant 0 : index
    %c0_14 = arith.constant 0 : index
    %41 = vector.load %arg1[%c1, %c0_13, %c0_14] : memref<3x32x8xf32, #tpu.memory_space<vmem>>, vector<1x32x8xf32>
    %42 = vector.shape_cast %41 : vector<1x32x8xf32> to vector<32x8xf32>
    %cst_15 = arith.constant dense<0.000000e+00> : vector<32x128xf32>
    %43 = tpu.matmul %42, %0, %cst_15 {dimension_numbers = #tpu.dot_dimension_numbers<[1], [0], [0], [1], [0, 0, 1, 1], [], []>} : vector<32x8xf32>, vector<8x128xf32>, vector<32x128xf32> -> vector<32x128xf32>
    %44 = arith.addf %40, %43 : vector<32x128xf32>
    %c127_i32 = arith.constant 127 : i32
    %45 = tpu.dynamic_rotate %0 by %c127_i32 dim 1 : vector<8x128xf32>, i32 -> vector<8x128xf32>
    %c1_i32_16 = arith.constant 1 : i32
    %46 = vector.broadcast %c1_i32_16 : i32 to vector<1x128xi32>
    %47 = arith.addi %17, %46 : vector<1x128xi32>
    %c0_i32_17 = arith.constant 0 : i32
    %48 = vector.broadcast %c0_i32_17 : i32 to vector<1x128xi32>
    %49 = arith.cmpi sge, %47, %48 : vector<1x128xi32>
    %c1_i32_18 = arith.constant 1 : i32
    %50 = vector.broadcast %c1_i32_18 : i32 to vector<1x128xi32>
    %51 = arith.addi %17, %50 : vector<1x128xi32>
    %c16_i32_19 = arith.constant 16 : i32
    %52 = vector.broadcast %c16_i32_19 : i32 to vector<1x128xi32>
    %53 = arith.cmpi slt, %51, %52 : vector<1x128xi32>
    %54 = arith.andi %49, %53 : vector<1x128xi1>
    %55 = arith.andi %54, %19 : vector<1x128xi1>
    %c0_i32_20 = arith.constant 0 : i32
    %56 = arith.sitofp %c0_i32_20 : i32 to f32
    %57 = vector.shape_cast %55 : vector<1x128xi1> to vector<1x128xi1>
    %58 = vector.broadcast %57 : vector<1x128xi1> to vector<8x128xi1>
    %59 = vector.broadcast %56 : f32 to vector<8x128xf32>
    %60 = arith.select %58, %45, %59 : vector<8x128xi1>, vector<8x128xf32>
    %c2 = arith.constant 2 : index
    %c0_21 = arith.constant 0 : index
    %c0_22 = arith.constant 0 : index
    %61 = vector.load %arg1[%c2, %c0_21, %c0_22] : memref<3x32x8xf32, #tpu.memory_space<vmem>>, vector<1x32x8xf32>
    %62 = vector.shape_cast %61 : vector<1x32x8xf32> to vector<32x8xf32>
    %cst_23 = arith.constant dense<0.000000e+00> : vector<32x128xf32>
    %63 = tpu.matmul %62, %60, %cst_23 {dimension_numbers = #tpu.dot_dimension_numbers<[1], [0], [0], [1], [0, 0, 1, 1], [], []>} : vector<32x8xf32>, vector<8x128xf32>, vector<32x128xf32> -> vector<32x128xf32>
    %64 = arith.addf %44, %63 : vector<32x128xf32>
    %c0_24 = arith.constant 0 : index
    %c0_25 = arith.constant 0 : index
    %65 = vector.load %arg2[%c0_24, %c0_25] : memref<32x8xf32, #tpu.memory_space<vmem>>, vector<32x8xf32>
    %cst_26 = arith.constant dense<0.000000e+00> : vector<32x128xf32>
    %66 = tpu.matmul %65, %0, %cst_26 {dimension_numbers = #tpu.dot_dimension_numbers<[1], [0], [0], [1], [0, 0, 1, 1], [], []>} : vector<32x8xf32>, vector<8x128xf32>, vector<32x128xf32> -> vector<32x128xf32>
    %cst_27 = arith.constant dense<0.000000e+00> : vector<32xf32>
    %67 = vector.multi_reduction <add>, %64, %cst_27 [1] : vector<32x128xf32> to vector<32xf32>
    %68 = vector.shape_cast %67 : vector<32xf32> to vector<32x1xf32>
    %cst_28 = arith.constant 3.125000e-02 : f32
    %69 = vector.broadcast %cst_28 : f32 to vector<32x1xf32>
    %70 = arith.mulf %68, %69 : vector<32x1xf32>
    %71 = vector.broadcast %70 : vector<32x1xf32> to vector<32x128xf32>
    %72 = arith.subf %64, %71 : vector<32x128xf32>
    %cst_29 = arith.constant 0.000000e+00 : f32
    %73 = vector.shape_cast %19 : vector<1x128xi1> to vector<1x128xi1>
    %74 = vector.broadcast %73 : vector<1x128xi1> to vector<32x128xi1>
    %75 = vector.broadcast %cst_29 : f32 to vector<32x128xf32>
    %76 = arith.select %74, %72, %75 : vector<32x128xi1>, vector<32x128xf32>
    %77 = arith.mulf %76, %76 : vector<32x128xf32>
    %cst_30 = arith.constant dense<0.000000e+00> : vector<32xf32>
    %78 = vector.multi_reduction <add>, %77, %cst_30 [1] : vector<32x128xf32> to vector<32xf32>
    %79 = vector.shape_cast %78 : vector<32xf32> to vector<32x1xf32>
    %cst_31 = arith.constant 3.125000e-02 : f32
    %80 = vector.broadcast %cst_31 : f32 to vector<32x1xf32>
    %81 = arith.mulf %79, %80 : vector<32x1xf32>
    %cst_32 = arith.constant 9.99999974E-6 : f32
    %82 = vector.broadcast %cst_32 : f32 to vector<32x1xf32>
    %83 = arith.addf %81, %82 : vector<32x1xf32>
    %84 = math.rsqrt %83 : vector<32x1xf32>
    %c0_33 = arith.constant 0 : index
    %c0_34 = arith.constant 0 : index
    %85 = vector.load %arg3[%c0_33, %c0_34] : memref<32x1xf32, #tpu.memory_space<vmem>>, vector<32x1xf32>
    %86 = arith.mulf %84, %85 : vector<32x1xf32>
    %87 = vector.broadcast %86 : vector<32x1xf32> to vector<32x128xf32>
    %88 = arith.mulf %72, %87 : vector<32x128xf32>
    %c0_35 = arith.constant 0 : index
    %c0_36 = arith.constant 0 : index
    %89 = vector.load %arg4[%c0_35, %c0_36] : memref<32x1xf32, #tpu.memory_space<vmem>>, vector<32x1xf32>
    %90 = vector.broadcast %89 : vector<32x1xf32> to vector<32x128xf32>
    %91 = arith.addf %88, %90 : vector<32x128xf32>
    %92 = arith.addf %91, %66 : vector<32x128xf32>
    %cst_37 = arith.constant 0.000000e+00 : f32
    %93 = vector.broadcast %cst_37 : f32 to vector<32x128xf32>
    %94 = arith.maximumf %92, %93 : vector<32x128xf32>
    %c0_38 = arith.constant 0 : index
    %c0_39 = arith.constant 0 : index
    %95 = vector.load %arg5[%c0_38, %c0_39] : memref<32x128xf32, #tpu.memory_space<vmem>>, vector<32x128xf32>
    tpu.vector_store %arg5[%c0_38, %c0_39], %94 {strides = array<i32>} : memref<32x128xf32, #tpu.memory_space<vmem>>, vector<32x128xf32>,
    return
  }
}

</mosaic_0001>

<llo_original>
// kernel: tpu_custom_call.1
$region0: #{tpu_custom_call.1}
  #allocation0 [shape = 'u32[]', space=smem, size = 0x4, offset = 0x4, fixed_abs, tag = 'smem constant byte address 0x4 - core index']
  #allocation1 [shape = 'u32[72,128]{1,0:T(1,128)}', space=vmem, size = 0x9000, scoped, tag = 'internal scratch']
  %s0 = inlined_call_operand.vmem [shape: f32[8,128], index: 0, kind: input, shape index: {}]
  %s1 = inlined_call_operand.vmem [shape: f32[3,32,8], index: 1, kind: input, shape index: {}]
  %s2 = inlined_call_operand.vmem [shape: f32[32,8], index: 2, kind: input, shape index: {}]
  %s3 = inlined_call_operand.vmem [shape: f32[32,1], index: 3, kind: input, shape index: {}]
  %s4 = inlined_call_operand.vmem [shape: f32[32,1], index: 4, kind: input, shape index: {}]
  %s5 = inlined_call_operand.hbm [shape: f32[32,128], index: 5, kind: output, shape index: {}]
  %s6 = sld [smem:[#allocation0]]
  $region30: #{tpu_custom_call.1} parent=0
    _
  %s8 = ssub.s32 1, %s6
  %s9 = scalar_select 0, %s8, %s6
  $region1: #{tpu_custom_call.1} parent=0
    #allocation2 [shape = 'u8[16384]{0}', space=vmem, size = 0x4000, scoped, tag = 'output window, operand 0, single buffered']
    #allocation3 [shape = 's32[1]{0}', space=sflag, size = 0x4, scoped, tag = 'scoped memory for tpu_custom_call.1']
    %10 = vsyncpa [#allocation3], 0
    // Predicated region
    $region2: #{tpu_custom_call.1} parent=1 // pred_check
      _
    $region3: #{tpu_custom_call.1} parent=1 // pred_check_branch
      %12 = sbr.rel (0) target = $region5
    $region4: #{tpu_custom_call.1} parent=1 // pred_region
      _
    $region5: #{tpu_custom_call.1} parent=1 // pred_fallthru
      _
    // Predicated region
    $region6: #{tpu_custom_call.1} parent=1 // pred_check
      _
    $region7: #{tpu_custom_call.1} parent=1 // pred_check_branch
      %14 = sbr.rel (0) target = $region9
    $region8: #{tpu_custom_call.1} parent=1 // pred_region
      _
    $region9: #{tpu_custom_call.1} parent=1 // pred_fallthru
      _
    // Predicated region
    $region10: #{tpu_custom_call.1} parent=1 // pred_check
      _
    $region11: #{tpu_custom_call.1} parent=1 // pred_check_branch
      %16 = sbr.rel (0) target = $region13
    $region12: #{tpu_custom_call.1} parent=1 // pred_region
      _
    $region13: #{tpu_custom_call.1} parent=1 // pred_fallthru
      _
    // Predicated region
    $region14: #{tpu_custom_call.1} parent=1 // pred_check
      _
    $region15: #{tpu_custom_call.1} parent=1 // pred_check_branch
      %18 = sbr.rel (0) target = $region17
    $region16: #{tpu_custom_call.1} parent=1 // pred_region
      _
    $region17: #{tpu_custom_call.1} parent=1 // pred_fallthru
      _
    // Predicated region
    $region18: #{tpu_custom_call.1} parent=1 // pred_check
      _
    $region19: #{tpu_custom_call.1} parent=1 // pred_check_branch
      %20 = sbr.rel (0) target = $region21
    $region20: #{tpu_custom_call.1} parent=1 // pred_region
      _
    $region21: #{tpu_custom_call.1} parent=1 // pred_fallthru
      _
    %v21 = vld [vmem:[%s0] sm:$0xff]
    %v22 = vlaneseq
    %v23 = vand.u32 %v22, 127
    %vm24 = vcmp.lt.s32.totalorder %v23, 0
    %v25 = vsub.s32 0, %v23
    %v26 = vsel %vm24, %v25, %v23
    %v27 = vshrl.u32 %v26, 4
    %v28 = vand.u32 %v26, 15
    %v29 = vsub.s32 0, %v28
    %v30 = vsel %vm24, %v29, %v28
    %vm31 = vcmp.ne.s32.totalorder %v30, 0
    %vm32 = vcmp.lt.s32.totalorder %v30, 0
    %vm33 = vmand %vm32, %vm31
    %v34 = vadd.s32 %v30, 16
    %v35 = vsel %vm33, %v34, %v30
    %vm36 = vcmp.lt.s32.totalorder %v23, 32
    %37 = vrot.lane.b32.xlu0 %v21, 1
    %v38 = vpop.permute.xlu0 %37
    %v39 = vadd.s32 %v35, 4294967295
    %vm40 = vcmp.ge.s32.totalorder %v39, 0
    %vm41 = vcmp.lt.s32.totalorder %v39, 16
    %vm42 = vmand %vm40, %vm41
    %vm43 = vmand %vm42, %vm36
    %v44 = vsel %vm43, 1, 0
    %vm45 = vcmp.eq.s32.totalorder %v44, 1
    %v46 = vsel %vm45, %v38, 0.0
    %v47 = vld [vmem:[%s1] sm:$0xff]
    %v48 = vld [vmem:[%s1 + $0x8] sm:$0xff]
    %v49 = vld [vmem:[%s1 + $0x10] sm:$0xff]
    %v50 = vld [vmem:[%s1 + $0x18] sm:$0xff]
    %s51 = scalar_lea.vmem %s1, 32
    %v52 = vld [vmem:[%s51] sm:$0xff]
    %v53 = vld [vmem:[%s51 + $0x8] sm:$0xff]
    %v54 = vld [vmem:[%s51 + $0x10] sm:$0xff]
    %v55 = vld [vmem:[%s51 + $0x18] sm:$0xff]
    %vm56 = vcmask 64512
    %v58 = vsel %vm56, %v52, 0
    %v61 = vsel %vm56, %v53, 0
    %v64 = vsel %vm56, %v54, 0
    %v67 = vsel %vm56, %v55, 0
    %69 = vmatpush.msra.mxu0 0.0
    %70 = vmatpush.msra.mxu0 0.0
    %71 = vmatpush.msra.mxu0 0.0
    %72 = vmatpush.msra.mxu0 0.0
    %73 = vmatpush.msra.mxu0 0.0
    %74 = vmatpush.msra.mxu0 0.0
    %75 = vmatpush.msra.mxu0 0.0
    %76 = vmatpush.msra.mxu0 0.0
    %77 = vmatpush.msra.mxu0 0.0
    %78 = vmatpush.msra.mxu0 0.0
    %79 = vmatpush.msra.mxu0 0.0
    %80 = vmatpush.msra.mxu0 0.0
    %81 = vmatpush.msra.mxu0 0.0
    %82 = vmatpush.msra.mxu0 0.0
    %83 = vmatpush.msra.mxu0 0.0
    %84 = vmatpush.msra.mxu0 %v21
    %85 = vmatmul.f32.gmra.mxu0 %v58
    %v86 = vpop.f32.mrf.mxu0
    %v87 = vadd.f32 0.0, %v86
    %88 = vmatmul.f32.gmra.mxu0 %v61
    %v89 = vpop.f32.mrf.mxu0
    %v90 = vadd.f32 0.0, %v89
    %91 = vmatmul.f32.gmra.mxu0 %v64
    %v92 = vpop.f32.mrf.mxu0
    %v93 = vadd.f32 0.0, %v92
    %94 = vmatmul.f32.gmra.mxu0 %v67
    %v95 = vpop.f32.mrf.mxu0
    %v96 = vadd.f32 0.0, %v95
    %97 = vdwg.mxu0
    %v99 = vsel %vm56, %v47, 0
    %v102 = vsel %vm56, %v48, 0
    %v105 = vsel %vm56, %v49, 0
    %v108 = vsel %vm56, %v50, 0
    %110 = vmatpush.msra.mxu0 0.0
    %111 = vmatpush.msra.mxu0 0.0
    %112 = vmatpush.msra.mxu0 0.0
    %113 = vmatpush.msra.mxu0 0.0
    %114 = vmatpush.msra.mxu0 0.0
    %115 = vmatpush.msra.mxu0 0.0
    %116 = vmatpush.msra.mxu0 0.0
    %117 = vmatpush.msra.mxu0 0.0
    %118 = vmatpush.msra.mxu0 0.0
    %119 = vmatpush.msra.mxu0 0.0
    %120 = vmatpush.msra.mxu0 0.0
    %121 = vmatpush.msra.mxu0 0.0
    %122 = vmatpush.msra.mxu0 0.0
    %123 = vmatpush.msra.mxu0 0.0
    %124 = vmatpush.msra.mxu0 0.0
    %125 = vmatpush.msra.mxu0 %v46
    %126 = vmatmul.f32.gmra.mxu0 %v99
    %v127 = vpop.f32.mrf.mxu0
    %v128 = vadd.f32 %v87, %v127
    %129 = vmatmul.f32.gmra.mxu0 %v102
    %v130 = vpop.f32.mrf.mxu0
    %v131 = vadd.f32 %v90, %v130
    %132 = vmatmul.f32.gmra.mxu0 %v105
    %v133 = vpop.f32.mrf.mxu0
    %v134 = vadd.f32 %v93, %v133
    %135 = vmatmul.f32.gmra.mxu0 %v108
    %v136 = vpop.f32.mrf.mxu0
    %v137 = vadd.f32 %v96, %v136
    %138 = vdwg.mxu0
    %139 = vrot.lane.b32.xlu0 %v21, 127
    %v140 = vpop.permute.xlu0 %139
    %v141 = vadd.s32 %v35, 1
    %vm142 = vcmp.ge.s32.totalorder %v141, 0
    %vm143 = vcmp.lt.s32.totalorder %v141, 16
    %vm144 = vmand %vm142, %vm143
    %vm145 = vmand %vm144, %vm36
    %v146 = vsel %vm145, 1, 0
    %vm147 = vcmp.eq.s32.totalorder %v146, 1
    %v148 = vsel %vm147, %v140, 0.0
    %s149 = scalar_lea.vmem %s1, 64
    %v150 = vld [vmem:[%s149] sm:$0xff]
    %v151 = vld [vmem:[%s149 + $0x8] sm:$0xff]
    %v152 = vld [vmem:[%s149 + $0x10] sm:$0xff]
    %v153 = vld [vmem:[%s149 + $0x18] sm:$0xff]
    %v155 = vsel %vm56, %v150, 0
    %v158 = vsel %vm56, %v151, 0
    %v161 = vsel %vm56, %v152, 0
    %v164 = vsel %vm56, %v153, 0
    %166 = vmatpush.msra.mxu0 0.0
    %167 = vmatpush.msra.mxu0 0.0
    %168 = vmatpush.msra.mxu0 0.0
    %169 = vmatpush.msra.mxu0 0.0
    %170 = vmatpush.msra.mxu0 0.0
    %171 = vmatpush.msra.mxu0 0.0
    %172 = vmatpush.msra.mxu0 0.0
    %173 = vmatpush.msra.mxu0 0.0
    %174 = vmatpush.msra.mxu0 0.0
    %175 = vmatpush.msra.mxu0 0.0
    %176 = vmatpush.msra.mxu0 0.0
    %177 = vmatpush.msra.mxu0 0.0
    %178 = vmatpush.msra.mxu0 0.0
    %179 = vmatpush.msra.mxu0 0.0
    %180 = vmatpush.msra.mxu0 0.0
    %181 = vmatpush.msra.mxu0 %v148
    %182 = vmatmul.f32.gmra.mxu0 %v155
    %v183 = vpop.f32.mrf.mxu0
    %v184 = vadd.f32 0.0, %v183
    %185 = vmatmul.f32.gmra.mxu0 %v158
    %v186 = vpop.f32.mrf.mxu0
    %v187 = vadd.f32 0.0, %v186
    %188 = vmatmul.f32.gmra.mxu0 %v161
    %v189 = vpop.f32.mrf.mxu0
    %v190 = vadd.f32 0.0, %v189
    %191 = vmatmul.f32.gmra.mxu0 %v164
    %v192 = vpop.f32.mrf.mxu0
    %v193 = vadd.f32 0.0, %v192
    %194 = vdwg.mxu0
    %v195 = vadd.f32 %v128, %v184
    %v196 = vadd.f32 %v131, %v187
    %v197 = vadd.f32 %v134, %v190
    %v198 = vadd.f32 %v137, %v193
    %v199 = vld [vmem:[%s2] sm:$0xff]
    %v200 = vld [vmem:[%s2 + $0x8] sm:$0xff]
    %v201 = vld [vmem:[%s2 + $0x10] sm:$0xff]
    %v202 = vld [vmem:[%s2 + $0x18] sm:$0xff]
    %v204 = vsel %vm56, %v199, 0
    %v207 = vsel %vm56, %v200, 0
    %v210 = vsel %vm56, %v201, 0
    %v213 = vsel %vm56, %v202, 0
    %215 = vmatpush.msra.mxu0 0.0
    %216 = vmatpush.msra.mxu0 0.0
    %217 = vmatpush.msra.mxu0 0.0
    %218 = vmatpush.msra.mxu0 0.0
    %219 = vmatpush.msra.mxu0 0.0
    %220 = vmatpush.msra.mxu0 0.0
    %221 = vmatpush.msra.mxu0 0.0
    %222 = vmatpush.msra.mxu0 0.0
    %223 = vmatpush.msra.mxu0 0.0
    %224 = vmatpush.msra.mxu0 0.0
    %225 = vmatpush.msra.mxu0 0.0
    %226 = vmatpush.msra.mxu0 0.0
    %227 = vmatpush.msra.mxu0 0.0
    %228 = vmatpush.msra.mxu0 0.0
    %229 = vmatpush.msra.mxu0 0.0
    %230 = vmatpush.msra.mxu0 %v21
    %231 = vmatmul.f32.gmra.mxu0 %v204
    %v232 = vpop.f32.mrf.mxu0
    %v233 = vadd.f32 0.0, %v232
    %234 = vmatmul.f32.gmra.mxu0 %v207
    %v235 = vpop.f32.mrf.mxu0
    %v236 = vadd.f32 0.0, %v235
    %237 = vmatmul.f32.gmra.mxu0 %v210
    %v238 = vpop.f32.mrf.mxu0
    %v239 = vadd.f32 0.0, %v238
    %240 = vmatmul.f32.gmra.mxu0 %v213
    %v241 = vpop.f32.mrf.mxu0
    %v242 = vadd.f32 0.0, %v241
    %243 = vdwg.mxu0
    %244 = vadd.xlane.f32.xlu0 %v195
    %v245 = vpop.xlane.xlu0 %244
    %246 = vadd.xlane.f32.xlu0 %v196
    %v247 = vpop.xlane.xlu0 %246
    %248 = vadd.xlane.f32.xlu0 %v197
    %v249 = vpop.xlane.xlu0 %248
    %250 = vadd.xlane.f32.xlu0 %v198
    %v251 = vpop.xlane.xlu0 %250
    %v252 = vmul.f32 %v245, 0.03125
    %v253 = vmul.f32 %v247, 0.03125
    %v254 = vmul.f32 %v249, 0.03125
    %v255 = vmul.f32 %v251, 0.03125
    %v256 = vsub.f32 %v195, %v252
    %v257 = vsub.f32 %v196, %v253
    %v258 = vsub.f32 %v197, %v254
    %v259 = vsub.f32 %v198, %v255
    %v260 = vsel %vm36, 1, 0
    %vm261 = vcmp.eq.s32.totalorder %v260, 1
    %v262 = vsel %vm261, %v256, 0.0
    %v263 = vsel %vm261, %v257, 0.0
    %v264 = vsel %vm261, %v258, 0.0
    %v265 = vsel %vm261, %v259, 0.0
    %v266 = vmul.f32 %v262, %v262
    %v267 = vmul.f32 %v263, %v263
    %v268 = vmul.f32 %v264, %v264
    %v269 = vmul.f32 %v265, %v265
    %270 = vadd.xlane.f32.xlu0 %v266
    %v271 = vpop.xlane.xlu0 %270
    %272 = vadd.xlane.f32.xlu0 %v267
    %v273 = vpop.xlane.xlu0 %272
    %274 = vadd.xlane.f32.xlu0 %v268
    %v275 = vpop.xlane.xlu0 %274
    %276 = vadd.xlane.f32.xlu0 %v269
    %v277 = vpop.xlane.xlu0 %276
    %v278 = vmul.f32 %v271, 0.03125
    %v279 = vmul.f32 %v273, 0.03125
    %v280 = vmul.f32 %v275, 0.03125
    %v281 = vmul.f32 %v277, 0.03125
    %v282 = vadd.f32 %v278, 1e-05
    %v283 = vadd.f32 %v279, 1e-05
    %v284 = vadd.f32 %v280, 1e-05
    %v285 = vadd.f32 %v281, 1e-05
    %v286 = vrsqrt.pop %v282
    %v287 = vmul.f32 %v286, %v282
    %v288 = vmul.f32 %v287, %v286
    %v289 = vmul.f32 0.5, %v288
    %v290 = vsub.f32 1.5, %v289
    %v291 = vmul.f32 %v286, %v290
    %vm292 = vweird.f32 %v282
    %vm293 = vweird.f32 %v286
    %vm294 = vmor %vm292, %vm293
    %v295 = vsel %vm294, %v286, %v291
    %v296 = vrsqrt.pop %v283
    %v297 = vmul.f32 %v296, %v283
    %v298 = vmul.f32 %v297, %v296
    %v299 = vmul.f32 0.5, %v298
    %v300 = vsub.f32 1.5, %v299
    %v301 = vmul.f32 %v296, %v300
    %vm302 = vweird.f32 %v283
    %vm303 = vweird.f32 %v296
    %vm304 = vmor %vm302, %vm303
    %v305 = vsel %vm304, %v296, %v301
    %v306 = vrsqrt.pop %v284
    %v307 = vmul.f32 %v306, %v284
    %v308 = vmul.f32 %v307, %v306
    %v309 = vmul.f32 0.5, %v308
    %v310 = vsub.f32 1.5, %v309
    %v311 = vmul.f32 %v306, %v310
    %vm312 = vweird.f32 %v284
    %vm313 = vweird.f32 %v306
    %vm314 = vmor %vm312, %vm313
    %v315 = vsel %vm314, %v306, %v311
    %v316 = vrsqrt.pop %v285
    %v317 = vmul.f32 %v316, %v285
    %v318 = vmul.f32 %v317, %v316
    %v319 = vmul.f32 0.5, %v318
    %v320 = vsub.f32 1.5, %v319
    %v321 = vmul.f32 %v316, %v320
    %vm322 = vweird.f32 %v285
    %vm323 = vweird.f32 %v316
    %vm324 = vmor %vm322, %vm323
    %v325 = vsel %vm324, %v316, %v321
    %v326 = vld [vmem:[%s3] sm:$0xff]
    %v327 = vld [vmem:[%s3 + $0x8] sm:$0xff]
    %v328 = vld [vmem:[%s3 + $0x10] sm:$0xff]
    %v329 = vld [vmem:[%s3 + $0x18] sm:$0xff]
    %v330 = vmul.f32 %v295, %v326
    %v331 = vmul.f32 %v305, %v327
    %v332 = vmul.f32 %v315, %v328
    %v333 = vmul.f32 %v325, %v329
    %335 = vset.pattern.permute.xlu0 0
    %336 = vperm.xlu0 %335, %v330
    %v337 = vpop.permute.xlu0 %336
    %340 = vset.pattern.permute.xlu0 0
    %341 = vperm.xlu0 %340, %v331
    %v342 = vpop.permute.xlu0 %341
    %345 = vset.pattern.permute.xlu0 0
    %346 = vperm.xlu0 %345, %v332
    %v347 = vpop.permute.xlu0 %346
    %350 = vset.pattern.permute.xlu0 0
    %351 = vperm.xlu0 %350, %v333
    %v352 = vpop.permute.xlu0 %351
    %v354 = vmul.f32 %v256, %v337
    %v355 = vmul.f32 %v257, %v342
    %v356 = vmul.f32 %v258, %v347
    %v357 = vmul.f32 %v259, %v352
    %v358 = vld [vmem:[%s4] sm:$0xff]
    %v359 = vld [vmem:[%s4 + $0x8] sm:$0xff]
    %v360 = vld [vmem:[%s4 + $0x10] sm:$0xff]
    %v361 = vld [vmem:[%s4 + $0x18] sm:$0xff]
    %363 = vset.pattern.permute.xlu0 0
    %364 = vperm.xlu0 %363, %v358
    %v365 = vpop.permute.xlu0 %364
    %368 = vset.pattern.permute.xlu0 0
    %369 = vperm.xlu0 %368, %v359
    %v370 = vpop.permute.xlu0 %369
    %373 = vset.pattern.permute.xlu0 0
    %374 = vperm.xlu0 %373, %v360
    %v375 = vpop.permute.xlu0 %374
    %378 = vset.pattern.permute.xlu0 0
    %379 = vperm.xlu0 %378, %v361
    %v380 = vpop.permute.xlu0 %379
    %v382 = vadd.f32 %v354, %v365
    %v383 = vadd.f32 %v355, %v370
    %v384 = vadd.f32 %v356, %v375
    %v385 = vadd.f32 %v357, %v380
    %v386 = vadd.f32 %v382, %v233
    %v387 = vadd.f32 %v383, %v236
    %v388 = vadd.f32 %v384, %v239
    %v389 = vadd.f32 %v385, %v242
    %v390 = vmax.f32 %v386, 0.0
    %v391 = vmax.f32 %v387, 0.0
    %v392 = vmax.f32 %v388, 0.0
    %v393 = vmax.f32 %v389, 0.0
    %394 = vst [vmem:[#allocation2] sm:$0xff] %v390
    %395 = vst [vmem:[#allocation2 + $0x8] sm:$0xff] %v391
    %396 = vst [vmem:[#allocation2 + $0x10] sm:$0xff] %v392
    %397 = vst [vmem:[#allocation2 + $0x18] sm:$0xff] %v393
    // Predicated region
    $region22: #{tpu_custom_call.1} parent=1 // pred_check
      _
    $region23: #{tpu_custom_call.1} parent=1 // pred_check_branch
      %399 = sbr.rel (0) target = $region25
    $region24: #{tpu_custom_call.1} parent=1 // pred_region
      %401 = vsyncadd [#allocation3], 0
      %s402 = sshll.u32 [#allocation2], 4
      %s403 = int_to_ptr.vmem [resolvable:$true] %s402
      %s404 = sshll.u32 %s5, 4
      %s405 = int_to_ptr.hbm [resolvable:$true] %s404
      %410 = dma.vmem_to_hbm [thread:$0]  %s403, 512, %s405, [#allocation3], 128, 128, 8
    $region25: #{tpu_custom_call.1} parent=1 // pred_fallthru
      _
    // Predicated region
    $region26: #{tpu_custom_call.1} parent=1 // pred_check
      _
    $region27: #{tpu_custom_call.1} parent=1 // pred_check_branch
      %412 = sbr.rel (0) target = $region29
    $region28: #{tpu_custom_call.1} parent=1 // pred_region
      %414 = dma.done [#allocation3], 512
    $region29: #{tpu_custom_call.1} parent=1 // pred_fallthru
      _
    %415 = vsyncpa [#allocation3], 1

</llo_original>
